<compile_context>
chip_gen: v7x
topology: tpu7x:2x2x1
jax: 0.10.0
libtpu: 0.0.40
codegen_flags: <defaults>
</compile_context>

<pallas_src>
import functools

import jax
import jax.numpy as jnp
from jax import lax
from jax.experimental import pallas as pl
from jax.experimental.pallas import tpu as pltpu

_LANE = 128
_SUBLANE = 8
_VMEM_LIMIT_BYTES = 32 * 1024 * 1024   # safe on v5e/v6e and under v7x's 64 MiB


def _pwconv_bn_kernel(x_ref, w_ref, shift_ref, o_ref):
    # x_ref:     (tile_m, C) in x's original dtype (cast to bf16 in-kernel)
    # w_ref:     (C, C)      bf16   BN-scale-folded conv weight (out, in)
    # shift_ref: (C, 1)      f32    (conv_bias - running_mean) * scale + beta
    # o_ref:     (C, tile_m)        channels-first output tile (lane-dense)
    x = x_ref[...].astype(jnp.bfloat16)            # VPU cast, no HBM round trip
    # out[c_out, m] = sum_c_in w[c_out, c_in] * x[m, c_in]   -> (C, tile_m)
    y = lax.dot_general(
        w_ref[...], x,
        dimension_numbers=(((1,), (1,)), ((), ())),
        preferred_element_type=jnp.float32)
    o_ref[...] = (y + shift_ref[...]).astype(o_ref.dtype)


def _round_up(v, m):
    return ((v + m - 1) // m) * m


def _pick_tile_m(n_rows, c, in_bytes, out_bytes, vmem_limit_bytes):
    """Row-tile choice: multiple of 128, capped at 1024, VMEM-model consistent
    with vmem_limit_bytes (lane/sublane padding accounted for)."""
    c_lane = max(_round_up(c, _LANE), _LANE)       # lane-padded C of the x block
    c_sub = max(_round_up(c, _SUBLANE), _SUBLANE)  # sublane-padded C (weight/out rows)

    # Resident (double-buffered by default) weight + shift.
    fixed = 2 * (c_sub * c_lane * 2) + 2 * (c_sub * _LANE * 4)
    margin = 2 * 1024 * 1024
    avail = vmem_limit_bytes - margin - fixed
    if avail <= 0:
        # TODO(synk): K-tiled accumulator path needed for this channel count.
        raise ValueError(
            f"Resident (C={c}) weight does not fit the {vmem_limit_bytes} B "
            "VMEM budget; a contraction-tiled path is required.")

    # Per tile_m row: double-buffered x block (lane-padded) + output column.
    per_row = 2 * c_lane * in_bytes + 2 * c_sub * out_bytes
    max_rows = avail // per_row

    tile = int(min(n_rows, max_rows, 1024))        # cap keeps grid pipelined
    if n_rows <= _LANE:
        return int(n_rows)                         # full-dim block is legal
    tile = max(tile, _LANE)
    return (tile // _LANE) * _LANE                 # lane-dense output writeback


@functools.partial(jax.jit, static_argnames=("H", "W"))
def custom_pw_conv(x, H, W, w_folded, shift):
    """x: (B, N, C) with N == H*W.  Returns (B, C, H, W) like the PyTorch module.

    w_folded: (C, C) conv weight (out, in) with the BN scale folded in.
    shift:    (C,)   per-channel additive term (conv bias / BN mean+beta folded).
    """
    B, N, C = x.shape
    assert N == H * W, "N must equal H*W"
    out_dtype = x.dtype
    in_bytes = jnp.dtype(x.dtype).itemsize
    out_bytes = jnp.dtype(out_dtype).itemsize

    # Weight/shift are tiny: cast in the wrapper (negligible HBM traffic).
    w_bf = w_folded.astype(jnp.bfloat16)
    shift2d = shift.astype(jnp.float32).reshape(C, 1)

    tile_m = _pick_tile_m(N, C, in_bytes, out_bytes, _VMEM_LIMIT_BYTES)
    n_tiles = pl.cdiv(N, tile_m)                   # ragged tail handled by Pallas

    cost = pl.CostEstimate(
        flops=2 * B * N * C * C,
        bytes_accessed=B * N * C * (in_bytes + out_bytes) + C * C * 2 + C * 4,
        transcendentals=0)

    out = pl.pallas_call(
        _pwconv_bn_kernel,
        out_shape=jax.ShapeDtypeStruct((B, C, N), out_dtype),
        grid_spec=pltpu.PrefetchScalarGridSpec(
            num_scalar_prefetch=0,
            grid=(B, n_tiles),
            in_specs=[
                pl.BlockSpec((None, tile_m, C), lambda b, i: (b, i, 0)),  # x tile
                pl.BlockSpec((C, C), lambda b, i: (0, 0)),   # weight (resident)
                pl.BlockSpec((C, 1), lambda b, i: (0, 0)),   # BN/bias shift
            ],
            out_specs=pl.BlockSpec((None, C, tile_m), lambda b, i: (b, 0, i)),
        ),
        compiler_params=pltpu.CompilerParams(
            dimension_semantics=("parallel", "parallel"),
            vmem_limit_bytes=_VMEM_LIMIT_BYTES),
        cost_estimate=cost,
    )(x, w_bf, shift2d)

    return out.reshape(B, C, H, W)                 # free reshape, no copy


def init_params(dim, key, dtype=jnp.float32, eps=1e-5):
    """Deterministic parameter init matching the module's __init__ shapes,
    with inference-mode BN folded into (w_folded, shift)."""
    k_w, k_b = jax.random.split(key)

    # Conv2d(dim, dim, 1): weight (dim, dim, 1, 1), kaiming_normal fan_in/relu
    fan_in = dim  # dim * 1 * 1
    std = (2.0 / fan_in) ** 0.5
    w_conv = jax.random.normal(k_w, (dim, dim), dtype) * std    # (out, in)
    bound = 1.0 / (fan_in ** 0.5)
    b_conv = jax.random.uniform(k_b, (dim,), dtype, -bound, bound)

    # BatchNorm2d(dim) defaults (inference / running stats)
    gamma = jnp.ones((dim,), dtype)
    beta = jnp.zeros((dim,), dtype)
    running_mean = jnp.zeros((dim,), dtype)
    running_var = jnp.ones((dim,), dtype)

    scale = gamma / jnp.sqrt(running_var + eps)                 # (dim,)
    # NOTE: folding scale into the weight is exact only for inference-mode BN.
    w_folded = w_conv * scale[:, None]                          # (out, in)
    shift = (b_conv - running_mean) * scale + beta              # (dim,)
    return w_folded, shift


if __name__ == "__main__":
    key = jax.random.PRNGKey(0)
    k_params, k_x = jax.random.split(key)

    B, C, H, W = 2, 32, 16, 16          # dim = 32
    N = H * W
    x = jax.random.normal(k_x, (B, N, C), jnp.float32)

    w_folded, shift = init_params(C, k_params)

    out = custom_pw_conv(x, H, W, w_folded, shift)
    jax.block_until_ready(out)

    # sanity check vs. plain-JAX reference (same bf16 rounding, f32 math)
    xb = x.astype(jnp.bfloat16).astype(jnp.float32)
    wb = w_folded.astype(jnp.bfloat16).astype(jnp.float32)
    ref = jnp.einsum("bnc,oc->bon", xb, wb) + shift[None, :, None]
    ref = ref.reshape(B, C, H, W)
    assert out.shape == (B, C, H, W)
    assert jnp.allclose(out, ref, atol=2e-3, rtol=2e-3), (
        float(jnp.max(jnp.abs(out - ref))))

    print("KERNEL_OK")
</pallas_src>

<mosaic_0001>
module attributes {stable_mosaic.version = 11 : i64} {
  func.func @_pwconv_bn_kernel(%arg0: i32, %arg1: i32, %arg2: memref<1x256x32xf32, #tpu.memory_space<vmem>>, %arg3: memref<32x32xbf16, #tpu.memory_space<vmem>>, %arg4: memref<32x1xf32, #tpu.memory_space<vmem>>, %arg5: memref<1x32x256xf32, #tpu.memory_space<vmem>>) attributes {dimension_semantics = [#tpu.dimension_semantics<parallel>, #tpu.dimension_semantics<parallel>], iteration_bounds = array<i64: 2, 1>, scalar_prefetch = 0 : i64, scratch_operands = 0 : i64, tpu.core_type = #tpu.core_type<tc>, window_params = [{transform_indices = @transform_0, window_bounds = array<i64: 1, 256, 32>}, {pipeline_mode = #tpu.pipeline_mode<synchronous>, transform_indices = @transform_1, window_bounds = array<i64: 32, 32>}, {pipeline_mode = #tpu.pipeline_mode<synchronous>, transform_indices = @transform_2, window_bounds = array<i64: 32, 1>}, {transform_indices = @transform_3, window_bounds = array<i64: 1, 32, 256>}]} {
    %c0 = arith.constant 0 : index
    %c0_0 = arith.constant 0 : index
    %c0_1 = arith.constant 0 : index
    %0 = vector.load %arg2[%c0, %c0_0, %c0_1] : memref<1x256x32xf32, #tpu.memory_space<vmem>>, vector<1x256x32xf32>
    %1 = vector.shape_cast %0 : vector<1x256x32xf32> to vector<256x32xf32>
    %2 = arith.truncf %1 : vector<256x32xf32> to vector<256x32xbf16>
    %c0_2 = arith.constant 0 : index
    %c0_3 = arith.constant 0 : index
    %3 = vector.load %arg3[%c0_2, %c0_3] : memref<32x32xbf16, #tpu.memory_space<vmem>>, vector<32x32xbf16>
    %cst = arith.constant dense<0.000000e+00> : vector<32x256xf32>
    %4 = tpu.matmul %3, %2, %cst {dimension_numbers = #tpu.dot_dimension_numbers<[1], [1], [0], [0], [0, 0, 1, 0], [], []>} : vector<32x32xbf16>, vector<256x32xbf16>, vector<32x256xf32> -> vector<32x256xf32>
    %c0_4 = arith.constant 0 : index
    %c0_5 = arith.constant 0 : index
    %5 = vector.load %arg4[%c0_4, %c0_5] : memref<32x1xf32, #tpu.memory_space<vmem>>, vector<32x1xf32>
    %6 = vector.broadcast %5 : vector<32x1xf32> to vector<32x256xf32>
    %7 = arith.addf %4, %6 : vector<32x256xf32>
    %c0_6 = arith.constant 0 : index
    %c0_7 = arith.constant 0 : index
    %c0_8 = arith.constant 0 : index
    %8 = vector.load %arg5[%c0_6, %c0_7, %c0_8] : memref<1x32x256xf32, #tpu.memory_space<vmem>>, vector<1x32x256xf32>
    %9 = vector.shape_cast %8 : vector<1x32x256xf32> to vector<32x256xf32>
    %10 = vector.shape_cast %7 : vector<32x256xf32> to vector<1x32x256xf32>
    tpu.vector_store %arg5[%c0_6, %c0_7, %c0_8], %10 {strides = array<i32>} : memref<1x32x256xf32, #tpu.memory_space<vmem>>, vector<1x32x256xf32>,
    return
  }
  func.func @transform_0(%arg0: i32, %arg1: i32) -> (i32, i32, i32) {
    %c0_i32 = arith.constant 0 : i32
    %c0_i32_0 = arith.constant 0 : i32
    return %arg0, %arg1, %c0_i32 : i32, i32, i32
  }
  func.func @transform_1(%arg0: i32, %arg1: i32) -> (i32, i32) {
    %c0_i32 = arith.constant 0 : i32
    %c0_i32_0 = arith.constant 0 : i32
    %c0_i32_1 = arith.constant 0 : i32
    return %c0_i32, %c0_i32_0 : i32, i32
  }
  func.func @transform_2(%arg0: i32, %arg1: i32) -> (i32, i32) {
    %c0_i32 = arith.constant 0 : i32
    %c0_i32_0 = arith.constant 0 : i32
    %c0_i32_1 = arith.constant 0 : i32
    return %c0_i32, %c0_i32_0 : i32, i32
  }
  func.func @transform_3(%arg0: i32, %arg1: i32) -> (i32, i32, i32) {
    %c0_i32 = arith.constant 0 : i32
    %c0_i32_0 = arith.constant 0 : i32
    return %arg0, %c0_i32, %arg1 : i32, i32, i32
  }
}

</mosaic_0001>

<llo_original>
// kernel: custom_pw_conv.1
$region0: #{custom_pw_conv.1}
  #allocation0 [shape = 'u32[]', space=smem, size = 0x4, offset = 0x4, fixed_abs, tag = 'smem constant byte address 0x4 - core index']
  #allocation1 [shape = 'u32[144,128]{1,0:T(1,128)}', space=vmem, size = 0x12000, scoped, tag = 'internal scratch']
  %s0 = inlined_call_operand.vmem [shape: f32[2,256,32], index: 0, kind: input, shape index: {}]
  %s1 = inlined_call_operand.vmem [shape: bf16[32,32], index: 1, kind: input, shape index: {}]
  %s2 = inlined_call_operand.vmem [shape: f32[32,1], index: 2, kind: input, shape index: {}]
  %s3 = inlined_call_operand.vmem [shape: f32[2,32,256], index: 3, kind: output, shape index: {}]
  %s4 = sld [smem:[#allocation0]]
  $region45: #{custom_pw_conv.1} parent=0
    _
  %s6 = ssub.s32 1, %s4
  %s7 = scalar_select 0, %s6, %s4
  loop: start=0, step=1, limit=4
  $region2: #{custom_pw_conv.1} parent=0 // loop_pre_header
    _
  $region3: #{custom_pw_conv.1} parent=0 // loop_header
    %s9 = sphi 0, %s13
    %p10 = scmp.ge.s32.totalorder %s9, 4
    %s16 = sphi 0, %s28
    %s17 = sphi 0, %s24
    %s18 = sphi 0, %s16
    %s19 = sphi 0, %s17
    %s20 = sphi 0, %s18
    %s21 = sphi 0, %s19
    %s33 = sphi 0, %s35
    %s36 = sphi 0, %s33
    %s37 = sphi 0, %s36
    %s53 = sphi 0, %s37
    %s57 = sphi 0, %s57
    %s59 = sphi 0, %s57
    %s60 = sphi 0, %s59
    %s74 = sphi 0, %s60
    %s78 = sphi 0, %s78
    %s80 = sphi 0, %s78
    %s81 = sphi 0, %s80
    %s95 = sphi 0, %s81
    %s103 = sphi 0, %s105
    %s106 = sphi 0, %s103
    %s107 = sphi 0, %s106
    %s123 = sphi 0, %s107
  $region4: #{custom_pw_conv.1} parent=0 // loop_header_branch
    %12 = sbr.rel (%p10) target = $region8
  $region5: #{custom_pw_conv.1} parent=0 // loop_body
    %s14 = ssub.s32 %s9, 1
    %s15 = ssub.s32 %s9, 2
    %s22 = sadd.s32 1, %s17
    %p23 = scmp.ge.s32.totalorder %s22, 1
    %s24 = scalar_select %p23, 0, %s22
    %s25 = sadd.s32 1, %s16
    %s26 = scalar_select %p23, %s25, %s16
    %p27 = scmp.ge.s32.totalorder %s26, 2
    %s28 = scalar_select %p27, 0, %s26
    %s29 = ssub.s32 %s16, %s28
    %s30 = ssub.s32 %s17, %s24
    %s31 = sor.u32 %s29, %s30
    %p32 = scmp.eq.s32.totalorder %s31, 0
    %s34 = sadd.s32 %s33, 1
    %s35 = scalar_select %p32, %s33, %s34
    %p38 = pneg %p32
    %p39 = scmp.eq.s32.totalorder %s9, 1
    %p40 = por %p38, %p39
    %p41 = scmp.ne.s32.totalorder %s33, %s36
    %p42 = scmp.eq.s32.totalorder %s9, 0
    %p43 = por %p41, %p42
    %p44 = scmp.ne.s32.totalorder %s33, %s36
    %p45 = scmp.eq.s32.totalorder %s14, 1
    %p46 = por %p44, %p45
    %p47 = scmp.ne.s32.totalorder %s36, %s37
    %p48 = scmp.eq.s32.totalorder %s14, 0
    %p49 = por %p47, %p48
    %p50 = scmp.ne.s32.totalorder %s36, %s37
    %p51 = scmp.eq.s32.totalorder %s15, 1
    %p52 = por %p50, %p51
    %p54 = scmp.ne.s32.totalorder %s37, %s53
    %p55 = scmp.eq.s32.totalorder %s15, 0
    %p56 = por %p54, %p55
    %s58 = sadd.s32 %s57, 1
    %p61 = scmp.eq.s32.totalorder %s9, 1
    %p62 = scmp.ne.s32.totalorder %s57, %s59
    %p63 = scmp.eq.s32.totalorder %s9, 0
    %p64 = por %p62, %p63
    %p65 = scmp.ne.s32.totalorder %s57, %s59
    %p66 = scmp.eq.s32.totalorder %s14, 1
    %p67 = por %p65, %p66
    %p68 = scmp.ne.s32.totalorder %s59, %s60
    %p69 = scmp.eq.s32.totalorder %s14, 0
    %p70 = por %p68, %p69
    %p71 = scmp.ne.s32.totalorder %s59, %s60
    %p72 = scmp.eq.s32.totalorder %s15, 1
    %p73 = por %p71, %p72
    %p75 = scmp.ne.s32.totalorder %s60, %s74
    %p76 = scmp.eq.s32.totalorder %s15, 0
    %p77 = por %p75, %p76
    %s79 = sadd.s32 %s78, 1
    %p82 = scmp.eq.s32.totalorder %s9, 1
    %p83 = scmp.ne.s32.totalorder %s78, %s80
    %p84 = scmp.eq.s32.totalorder %s9, 0
    %p85 = por %p83, %p84
    %p86 = scmp.ne.s32.totalorder %s78, %s80
    %p87 = scmp.eq.s32.totalorder %s14, 1
    %p88 = por %p86, %p87
    %p89 = scmp.ne.s32.totalorder %s80, %s81
    %p90 = scmp.eq.s32.totalorder %s14, 0
    %p91 = por %p89, %p90
    %p92 = scmp.ne.s32.totalorder %s80, %s81
    %p93 = scmp.eq.s32.totalorder %s15, 1
    %p94 = por %p92, %p93
    %p96 = scmp.ne.s32.totalorder %s81, %s95
    %p97 = scmp.eq.s32.totalorder %s15, 0
    %p98 = por %p96, %p97
    %s99 = ssub.s32 %s16, %s28
    %s100 = ssub.s32 %s17, %s24
    %s101 = sor.u32 %s99, %s100
    %p102 = scmp.eq.s32.totalorder %s101, 0
    %s104 = sadd.s32 %s103, 1
    %s105 = scalar_select %p102, %s103, %s104
    %p108 = pneg %p102
    %p109 = scmp.eq.s32.totalorder %s9, 1
    %p110 = por %p108, %p109
    %p111 = scmp.ne.s32.totalorder %s103, %s106
    %p112 = scmp.eq.s32.totalorder %s9, 0
    %p113 = por %p111, %p112
    %p114 = scmp.ne.s32.totalorder %s103, %s106
    %p115 = scmp.eq.s32.totalorder %s14, 1
    %p116 = por %p114, %p115
    %p117 = scmp.ne.s32.totalorder %s106, %s107
    %p118 = scmp.eq.s32.totalorder %s14, 0
    %p119 = por %p117, %p118
    %p120 = scmp.ne.s32.totalorder %s106, %s107
    %p121 = scmp.eq.s32.totalorder %s15, 1
    %p122 = por %p120, %p121
    %p124 = scmp.ne.s32.totalorder %s107, %s123
    %p125 = scmp.eq.s32.totalorder %s15, 0
    %p126 = por %p124, %p125
    %p127 = scmp.le.s32.totalorder 1, %s9
    %p128 = scmp.lt.s32.totalorder %s9, 3
    %p129 = pnand %p127, %p128
    %p130 = pneg %p129
    // Predicated region
    $region9: #{custom_pw_conv.1} parent=5 // pred_check
      _
    $region10: #{custom_pw_conv.1} parent=5 // pred_check_branch
      %132 = sbr.rel (%p129) target = $region12
    $region11: #{custom_pw_conv.1} parent=5 // pred_region
      %s133 = ssub.s32 %s9, 1
      // Predicated region
      $region13: #{custom_pw_conv.1} parent=11 // pred_check
        %p134 = pneg %p70
      $region14: #{custom_pw_conv.1} parent=11 // pred_check_branch
        %136 = sbr.rel (%p134) target = $region16
      $region15: #{custom_pw_conv.1} parent=11 // pred_region
        _
      $region16: #{custom_pw_conv.1} parent=11 // pred_fallthru
        _
      // Predicated region
      $region17: #{custom_pw_conv.1} parent=11 // pred_check
        %p137 = pneg %p91
      $region18: #{custom_pw_conv.1} parent=11 // pred_check_branch
        %139 = sbr.rel (%p137) target = $region20
      $region19: #{custom_pw_conv.1} parent=11 // pred_region
        _
      $region20: #{custom_pw_conv.1} parent=11 // pred_fallthru
        _
    $region12: #{custom_pw_conv.1} parent=5 // pred_fallthru
      _
    %p140 = scmp.lt.s32.totalorder %s9, 2
    // Predicated region
    $region21: #{custom_pw_conv.1} parent=5 // pred_check
      %p141 = pneg %p140
    $region22: #{custom_pw_conv.1} parent=5 // pred_check_branch
      %143 = sbr.rel (%p141) target = $region24
    $region23: #{custom_pw_conv.1} parent=5 // pred_region
      // Predicated region
      $region25: #{custom_pw_conv.1} parent=23 // pred_check
        %p144 = pneg %p43
      $region26: #{custom_pw_conv.1} parent=23 // pred_check_branch
        %146 = sbr.rel (%p144) target = $region28
      $region27: #{custom_pw_conv.1} parent=23 // pred_region
        %s147 = smul.u32 32, %s17
        %p148 = scmp.lt.s32.totalorder %s16, 1
        %s149 = scalar_select %p148, %s16, 1
        %p150 = scmp.lt.s32.totalorder %s147, 31
        %s151 = scalar_select %p150, %s147, 31
        %s152 = smul.addr %s149, 32
        %s153 = sadd.s32 %s151, %s152
        %s154 = smul.addr %s153, 8
        %s155 = scalar_lea.vmem %s0, %s154
        %s156 = smul.u32 32, %s17
      $region28: #{custom_pw_conv.1} parent=23 // pred_fallthru
        _
    $region24: #{custom_pw_conv.1} parent=5 // pred_fallthru
      _
    %p157 = scmp.le.s32.totalorder 1, %s9
    %p158 = scmp.lt.s32.totalorder %s9, 3
    %p159 = pnand %p157, %p158
    %p160 = pneg %p159
    // Predicated region
    $region29: #{custom_pw_conv.1} parent=5 // pred_check
      _
    $region30: #{custom_pw_conv.1} parent=5 // pred_check_branch
      %162 = sbr.rel (%p159) target = $region32
    $region31: #{custom_pw_conv.1} parent=5 // pred_region
      %s163 = ssub.s32 %s9, 1
      %s164 = smul.u32 32, %s19
      %p165 = scmp.lt.s32.totalorder %s18, 1
      %s166 = scalar_select %p165, %s18, 1
      %p167 = scmp.lt.s32.totalorder %s164, 31
      %s168 = scalar_select %p167, %s164, 31
      %s169 = smul.addr %s166, 32
      %s170 = sadd.s32 %s168, %s169
      %s171 = smul.addr %s170, 8
      %s172 = scalar_lea.vmem %s0, %s171
      %p173 = pneg %p49
      %p174 = pneg %p46
      %p175 = pneg %p70
      %p176 = pneg %p67
      %p177 = pneg %p91
      %p178 = pneg %p88
      %p179 = pneg %p119
      %p180 = pneg %p116
      %s181 = smul.u32 2, %s19
      %p182 = scmp.lt.s32.totalorder %s18, 1
      %s183 = scalar_select %p182, %s18, 1
      %p184 = scmp.lt.s32.totalorder %s181, 1
      %s185 = scalar_select %p184, %s181, 1
      %s186 = smul.addr %s183, 8
      %s187 = sadd.s32 %s185, %s186
      %s188 = smul.addr %s187, 8
      %s189 = scalar_lea.vmem %s3, %s188
      %s190 = smul.u32 32, %s19
      %p191 = scmp.lt.s32.totalorder %s18, 1
      %s192 = scalar_select %p191, %s18, 1
      %p193 = scmp.lt.s32.totalorder %s190, 31
      %s194 = scalar_select %p193, %s190, 31
      %s195 = smul.addr %s192, 32
      %s196 = sadd.s32 %s194, %s195
      %s197 = smul.addr %s196, 8
      %s198 = scalar_lea.vmem %s0, %s197
      %s199 = smul.u32 32, %s19
      %s200 = smul.u32 2, %s19
      %p201 = scmp.lt.s32.totalorder %s18, 1
      %s202 = scalar_select %p201, %s18, 1
      %p203 = scmp.lt.s32.totalorder %s200, 1
      %s204 = scalar_select %p203, %s200, 1
      %s205 = smul.addr %s202, 8
      %s206 = sadd.s32 %s204, %s205
      %s207 = smul.addr %s206, 8
      %s208 = scalar_lea.vmem %s3, %s207
      %s209 = smul.u32 2, %s19
      %v211 = vld [vmem:[%s198] sm:$0xff]
      %v212 = vld [vmem:[%s198 + $0x8] sm:$0xff]
      %v213 = vld [vmem:[%s198 + $0x10] sm:$0xff]
      %v214 = vld [vmem:[%s198 + $0x18] sm:$0xff]
      %v215 = vld [vmem:[%s198 + $0x20] sm:$0xff]
      %v216 = vld [vmem:[%s198 + $0x28] sm:$0xff]
      %v217 = vld [vmem:[%s198 + $0x30] sm:$0xff]
      %v218 = vld [vmem:[%s198 + $0x38] sm:$0xff]
      %v219 = vld [vmem:[%s198 + $0x40] sm:$0xff]
      %v220 = vld [vmem:[%s198 + $0x48] sm:$0xff]
      %v221 = vld [vmem:[%s198 + $0x50] sm:$0xff]
      %v222 = vld [vmem:[%s198 + $0x58] sm:$0xff]
      %v223 = vld [vmem:[%s198 + $0x60] sm:$0xff]
      %v224 = vld [vmem:[%s198 + $0x68] sm:$0xff]
      %v225 = vld [vmem:[%s198 + $0x70] sm:$0xff]
      %v226 = vld [vmem:[%s198 + $0x78] sm:$0xff]
      %v227 = vld [vmem:[%s198 + $0x80] sm:$0xff]
      %v228 = vld [vmem:[%s198 + $0x88] sm:$0xff]
      %v229 = vld [vmem:[%s198 + $0x90] sm:$0xff]
      %v230 = vld [vmem:[%s198 + $0x98] sm:$0xff]
      %v231 = vld [vmem:[%s198 + $0xa0] sm:$0xff]
      %v232 = vld [vmem:[%s198 + $0xa8] sm:$0xff]
      %v233 = vld [vmem:[%s198 + $0xb0] sm:$0xff]
      %v234 = vld [vmem:[%s198 + $0xb8] sm:$0xff]
      %v235 = vld [vmem:[%s198 + $0xc0] sm:$0xff]
      %v236 = vld [vmem:[%s198 + $0xc8] sm:$0xff]
      %v237 = vld [vmem:[%s198 + $0xd0] sm:$0xff]
      %v238 = vld [vmem:[%s198 + $0xd8] sm:$0xff]
      %v239 = vld [vmem:[%s198 + $0xe0] sm:$0xff]
      %v240 = vld [vmem:[%s198 + $0xe8] sm:$0xff]
      %v241 = vld [vmem:[%s198 + $0xf0] sm:$0xff]
      %v242 = vld [vmem:[%s198 + $0xf8] sm:$0xff]
      %v243 = vpack.c.bf16 %v212, %v211
      %v244 = vpack.c.bf16 %v214, %v213
      %v245 = vpack.c.bf16 %v216, %v215
      %v246 = vpack.c.bf16 %v218, %v217
      %v247 = vpack.c.bf16 %v220, %v219
      %v248 = vpack.c.bf16 %v222, %v221
      %v249 = vpack.c.bf16 %v224, %v223
      %v250 = vpack.c.bf16 %v226, %v225
      %v251 = vpack.c.bf16 %v228, %v227
      %v252 = vpack.c.bf16 %v230, %v229
      %v253 = vpack.c.bf16 %v232, %v231
      %v254 = vpack.c.bf16 %v234, %v233
      %v255 = vpack.c.bf16 %v236, %v235
      %v256 = vpack.c.bf16 %v238, %v237
      %v257 = vpack.c.bf16 %v240, %v239
      %v258 = vpack.c.bf16 %v242, %v241
      %v259 = vld [vmem:[%s1] sm:$0xf]
      %v260 = vld [vmem:[%s1 + $0x4] sm:$0xf]
      %v261 = vld [vmem:[%s1 + $0x8] sm:$0xf]
      %v262 = vld [vmem:[%s1 + $0xc] sm:$0xf]
      %v263 = vld [vmem:[%s2] sm:$0xff]
      %v264 = vld [vmem:[%s2 + $0x8] sm:$0xff]
      %v265 = vld [vmem:[%s2 + $0x10] sm:$0xff]
      %v266 = vld [vmem:[%s2 + $0x18] sm:$0xff]
      %268 = vset.pattern.permute.xlu0 0
      %269 = vperm.xlu0 %268, %v263
      %v270 = vpop.permute.xlu0 %269
      %273 = vset.pattern.permute.xlu0 0
      %274 = vperm.xlu0 %273, %v264
      %v275 = vpop.permute.xlu0 %274
      %278 = vset.pattern.permute.xlu0 0
      %279 = vperm.xlu0 %278, %v265
      %v280 = vpop.permute.xlu0 %279
      %283 = vset.pattern.permute.xlu0 0
      %284 = vperm.xlu0 %283, %v266
      %v285 = vpop.permute.xlu0 %284
      %v291 = vunpack.c.l.b16 %v259
      %v292 = vunpack.c.l.b16 %v260
      %v293 = vunpack.c.l.b16 %v261
      %v294 = vunpack.c.l.b16 %v262
      %v295 = vpack.c.b16 %v292, %v291
      %v296 = vpack.c.b16 %v294, %v293
      %vm297 = vcmask 261120
      %v299 = vsel %vm297, %v295, 0
      %v302 = vsel %vm297, %v296, 0
      %v305 = vsel %vm297, %v243, 0
      %v308 = vsel %vm297, %v244, 0
      %v311 = vsel %vm297, %v245, 0
      %v314 = vsel %vm297, %v246, 0
      %v317 = vsel %vm297, %v247, 0
      %v320 = vsel %vm297, %v248, 0
      %v323 = vsel %vm297, %v249, 0
      %v326 = vsel %vm297, %v250, 0
      %v329 = vsel %vm297, %v251, 0
      %v332 = vsel %vm297, %v252, 0
      %v335 = vsel %vm297, %v253, 0
      %v338 = vsel %vm297, %v254, 0
      %v341 = vsel %vm297, %v255, 0
      %v344 = vsel %vm297, %v256, 0
      %v347 = vsel %vm297, %v257, 0
      %v350 = vsel %vm297, %v258, 0
      %352 = vmatprep.subr.bf16.mxu0 0
      %353 = vmatpush1.bf16.xpose.msra.mxu0 %v305
      %354 = vmatprep.subr.bf16.mxu0 0
      %355 = vmatpush1.bf16.xpose.msra.mxu0 %v308
      %356 = vmatprep.subr.bf16.mxu0 0
      %357 = vmatpush1.bf16.xpose.msra.mxu0 %v311
      %358 = vmatprep.subr.bf16.mxu0 0
      %359 = vmatpush1.bf16.xpose.msra.mxu0 %v314
      %360 = vmatprep.subr.bf16.mxu0 0
      %361 = vmatpush1.bf16.xpose.msra.mxu0 %v317
      %362 = vmatprep.subr.bf16.mxu0 0
      %363 = vmatpush1.bf16.xpose.msra.mxu0 %v320
      %364 = vmatprep.subr.bf16.mxu0 0
      %365 = vmatpush1.bf16.xpose.msra.mxu0 %v323
      %366 = vmatprep.subr.bf16.mxu0 0
      %367 = vmatpush1.bf16.xpose.msra.mxu0 %v326
      %368 = vmatprep.subr.bf16.mxu0 0
      %369 = vmatpush1.bf16.xpose.msra.mxu0 %v329
      %370 = vmatprep.subr.bf16.mxu0 0
      %371 = vmatpush1.bf16.xpose.msra.mxu0 %v332
      %372 = vmatprep.subr.bf16.mxu0 0
      %373 = vmatpush1.bf16.xpose.msra.mxu0 %v335
      %374 = vmatprep.subr.bf16.mxu0 0
      %375 = vmatpush1.bf16.xpose.msra.mxu0 %v338
      %376 = vmatprep.subr.bf16.mxu0 0
      %377 = vmatpush1.bf16.xpose.msra.mxu0 %v341
      %378 = vmatprep.subr.bf16.mxu0 0
      %379 = vmatpush1.bf16.xpose.msra.mxu0 %v344
      %380 = vmatprep.subr.bf16.mxu0 0
      %381 = vmatpush1.bf16.xpose.msra.mxu0 %v347
      %382 = vmatprep.subr.bf16.mxu0 0
      %383 = vmatpush1.bf16.xpose.msra.mxu0 %v350
      %384 = vmatprep.mubr.bf16.mxu0 0
      %385 = vmatmul.mubr.bf16.gmra.mrb[0].mxu0 %v299
      %v386 = vpop.f32.mrb[0].mxu0
      %v387 = vadd.f32 %v270, %v386
      %v388 = vpop.f32.mrb[0].mxu0
      %v389 = vadd.f32 %v270, %v388
      %v390 = vpop.f32.mrb[0].mxu0
      %v391 = vadd.f32 %v275, %v390
      %v392 = vpop.f32.mrb[0].mxu0
      %v393 = vadd.f32 %v275, %v392
      %394 = vmatprep.mubr.bf16.mxu0 0
      %395 = vmatmul.mubr.bf16.gmra.mrb[0].mxu0 %v302
      %v396 = vpop.f32.mrb[0].mxu0
      %v397 = vadd.f32 %v280, %v396
      %v398 = vpop.f32.mrb[0].mxu0
      %v399 = vadd.f32 %v280, %v398
      %v400 = vpop.f32.mrb[0].mxu0
      %v401 = vadd.f32 %v285, %v400
      %v402 = vpop.f32.mrb[0].mxu0
      %v403 = vadd.f32 %v285, %v402
      %404 = vdwg.mxu0
      %405 = vst [vmem:[%s208] sm:$0xff] %v387
      %406 = vst [vmem:[%s208 + $0x8] sm:$0xff] %v389
      %407 = vst [vmem:[%s208 + $0x10] sm:$0xff] %v391
      %408 = vst [vmem:[%s208 + $0x18] sm:$0xff] %v393
      %409 = vst [vmem:[%s208 + $0x20] sm:$0xff] %v397
      %410 = vst [vmem:[%s208 + $0x28] sm:$0xff] %v399
      %411 = vst [vmem:[%s208 + $0x30] sm:$0xff] %v401
      %412 = vst [vmem:[%s208 + $0x38] sm:$0xff] %v403
      %s413 = smul.u32 2, %s19
      %p414 = scmp.lt.s32.totalorder %s18, 1
      %s415 = scalar_select %p414, %s18, 1
      %p416 = scmp.lt.s32.totalorder %s413, 1
      %s417 = scalar_select %p416, %s413, 1
      %s418 = smul.addr %s415, 8
      %s419 = sadd.s32 %s417, %s418
      %s420 = smul.addr %s419, 8
      %s421 = scalar_lea.vmem %s3, %s420
      // Predicated region
      $region33: #{custom_pw_conv.1} parent=31 // pred_check
        %p422 = pneg %p116
      $region34: #{custom_pw_conv.1} parent=31 // pred_check_branch
        %424 = sbr.rel (%p422) target = $region36
      $region35: #{custom_pw_conv.1} parent=31 // pred_region
        %s425 = smul.u32 2, %s19
      $region36: #{custom_pw_conv.1} parent=31 // pred_fallthru
        _
    $region32: #{custom_pw_conv.1} parent=5 // pred_fallthru
      _
    %p426 = scmp.le.s32.totalorder 2, %s9
    // Predicated region
    $region37: #{custom_pw_conv.1} parent=5 // pred_check
      %p427 = pneg %p426
    $region38: #{custom_pw_conv.1} parent=5 // pred_check_branch
      %429 = sbr.rel (%p427) target = $region40
    $region39: #{custom_pw_conv.1} parent=5 // pred_region
      %s430 = ssub.s32 %s9, 2
      // Predicated region
      $region41: #{custom_pw_conv.1} parent=39 // pred_check
        %p431 = pneg %p122
      $region42: #{custom_pw_conv.1} parent=39 // pred_check_branch
        %433 = sbr.rel (%p431) target = $region44
      $region43: #{custom_pw_conv.1} parent=39 // pred_region
        %s434 = smul.u32 2, %s21
        %p435 = scmp.lt.s32.totalorder %s20, 1
        %s436 = scalar_select %p435, %s20, 1
        %p437 = scmp.lt.s32.totalorder %s434, 1
        %s438 = scalar_select %p437, %s434, 1
        %s439 = smul.addr %s436, 8
        %s440 = sadd.s32 %s438, %s439
        %s441 = smul.addr %s440, 8
        %s442 = scalar_lea.vmem %s3, %s441
      $region44: #{custom_pw_conv.1} parent=39 // pred_fallthru
        _
    $region40: #{custom_pw_conv.1} parent=5 // pred_fallthru
      _
  $region6: #{custom_pw_conv.1} parent=0 // loop_footer
    %s13 = sadd.s32 1, %s9
  $region7: #{custom_pw_conv.1} parent=0 // loop_footer_branch
    %8 = sbr.rel target = $region3
  $region8: #{custom_pw_conv.1} parent=0 // loop_exit
    _

</llo_original>
